<compile_context>
chip_gen: v7x
topology: tpu7x:2x2x1
jax: 0.10.0
libtpu: 0.0.40
codegen_flags: <defaults>
</compile_context>

<pallas_src>
import functools
import math

import jax
import jax.numpy as jnp
from jax.experimental import pallas as pl
from jax.experimental.pallas import tpu as pltpu


_LANE = 128


def _round_up(x: int, m: int) -> int:
    return ((x + m - 1) // m) * m


def _pick_act_dtype():
    """bf16 elementwise on chips with a bf16 VPU (v6e/v7x+), f32 otherwise."""
    try:
        kind = jax.devices()[0].device_kind.lower()
    except Exception:  # pragma: no cover - defensive
        kind = ""
    if any(tag in kind for tag in ("v2", "v3", "v4", "v5")):
        return jnp.float32
    return jnp.bfloat16


def _critic_mlp_kernel(x_ref,
                       w1_ref, b1_ref,
                       w2_ref, b2_ref,
                       w3_ref, b3_ref,
                       wo_ref, bo_ref,
                       out_ref, *, act_dtype):
    """One grid step == (critic c, batch-tile i). Fused 4-layer MLP.

    Weights arrive in bfloat16 (halves weight HBM traffic, the binding resource);
    every matmul accumulates in float32 on the MXU.  Inter-layer bias-add / ReLU run
    in `act_dtype` (bf16 on v6e/v7x, f32 on older chips).
    """
    f32 = jnp.float32
    wd = w1_ref.dtype  # MXU input dtype (bf16)

    def hidden(x, w_ref, b_ref):
        h = jnp.dot(x.astype(wd), w_ref[...], preferred_element_type=f32)
        h = h.astype(act_dtype) + b_ref[...].astype(act_dtype)
        return jnp.maximum(h, 0.0)  # ReLU in act_dtype

    h = hidden(x_ref[...], w1_ref, b1_ref)
    h = hidden(h, w2_ref, b2_ref)
    h = hidden(h, w3_ref, b3_ref)

    o = jnp.dot(h.astype(wd), wo_ref[...], preferred_element_type=f32)
    out_ref[...] = (o + bo_ref[...]).astype(out_ref.dtype)  # Identity output activation


def init_params(key, n_critics, d_in, hidden_sizes, n_quantiles):
    """Synthetic parameters matching the torch module layout (f32, stacked per critic)."""
    dims = (d_in,) + tuple(hidden_sizes) + (n_quantiles,)
    params = []
    for li in range(len(dims) - 1):
        fan_in, fan_out = dims[li], dims[li + 1]
        key, kw, kb = jax.random.split(key, 3)
        bound = 1.0 / math.sqrt(float(fan_in))
        w = jax.random.uniform(kw, (n_critics, fan_in, fan_out), jnp.float32, -bound, bound)
        b = jax.random.uniform(kb, (n_critics, 1, fan_out), jnp.float32, -bound, bound)
        params += [w, b]
    return tuple(params)


def prepare_params(params, weight_dtype=jnp.bfloat16):
    """One-time parameter preparation: cast weights to bf16 and pad the output layer
    to a multiple of 8 columns (sublane-aligned, NOT 128).  Do this once, not per call.
    """
    # TODO(synk): on v5e/v6e the MXU takes int8 natively; streaming int8 weights with
    # per-output-channel scales would halve weight HBM bytes again (do not apply on v7x).
    w1, b1, w2, b2, w3, b3, wo, bo = params
    n_quantiles = wo.shape[-1]
    pad = _round_up(n_quantiles, 8) - n_quantiles
    wo_p = jnp.pad(wo, ((0, 0), (0, 0), (0, pad)))
    bo_p = jnp.pad(bo, ((0, 0), (0, 0), (0, pad)))
    wd = weight_dtype
    f32 = jnp.float32
    return (w1.astype(wd), b1.astype(f32),
            w2.astype(wd), b2.astype(f32),
            w3.astype(wd), b3.astype(f32),
            wo_p.astype(wd), bo_p.astype(f32))


def quantile_ensemble_critics_forward(states, actions, prepared_params, n_quantiles,
                                      random_ensemble_size=None,
                                      force_random_ensemble=False,
                                      batch_tile=512,
                                      act_dtype=None):
    """JAX/Pallas equivalent of QuantileEnsembleCritics.forward (deterministic path).

    Returns a stacked (n_critics, B, n_quantiles) f32 array; `tuple(out)` reproduces the
    torch module's returned tuple (the stack avoids n_critics extra slice dispatches).
    """
    # TODO(synk): the force_random_ensemble / random_ensemble_size < n_critics branch uses
    # torch.randint with a torch.Generator; no clean deterministic Pallas equivalent, so
    # only the full-ensemble path is implemented here.
    del random_ensemble_size, force_random_ensemble

    w1, b1, w2, b2, w3, b3, wo, bo = prepared_params
    n_critics, d_in, h1 = w1.shape
    h2, h3 = w2.shape[-1], w3.shape[-1]
    q_pad = wo.shape[-1]
    wd = w1.dtype
    if act_dtype is None:
        act_dtype = _pick_act_dtype()

    # Single wrapper-side concat + cast: kernel sees one bf16 (B, d_in) input.
    x = jnp.concatenate([states, actions], axis=-1).astype(wd)
    B = x.shape[0]

    # Batch tiling. Single tile for small batches; otherwise MXU-M-friendly 256 multiple.
    if B <= batch_tile:
        bt = _round_up(B, 8)
    else:
        bt = _round_up(min(int(batch_tile), B), 256)
    b_pad = _round_up(B, bt)
    if b_pad != B:
        x = jnp.pad(x, ((0, b_pad - B), (0, 0)))
    n_btiles = b_pad // bt

    # Tight VMEM budget (lane/sublane-padded, double-buffered), capped for v7x's 64 MiB/TC.
    wb = jnp.dtype(wd).itemsize

    def _padded(r, c, itemsize):
        return _round_up(max(r, 1), 8) * _round_up(max(c, 1), _LANE) * itemsize

    weight_bytes = (_padded(d_in, h1, wb) + _padded(h1, h2, wb)
                    + _padded(h2, h3, wb) + _padded(h3, q_pad, wb))
    bias_bytes = (_padded(1, h1, 4) + _padded(1, h2, 4)
                  + _padded(1, h3, 4) + _padded(1, q_pad, 4))
    io_bytes = _padded(bt, d_in, wb) + _padded(bt, q_pad, 4)
    act_bytes = 3 * _padded(bt, max(h1, h2, h3), 4)
    vmem_need = 2 * (weight_bytes + bias_bytes + io_bytes) + act_bytes + (2 << 20)
    vmem_limit = int(min(40 * 2 ** 20, max(vmem_need, 8 * 2 ** 20)))

    kernel = functools.partial(_critic_mlp_kernel, act_dtype=act_dtype)

    out = pl.pallas_call(
        kernel,
        out_shape=jax.ShapeDtypeStruct((n_critics, b_pad, q_pad), jnp.float32),
        grid_spec=pltpu.PrefetchScalarGridSpec(
            num_scalar_prefetch=0,
            grid=(n_critics, n_btiles),
            in_specs=[
                # activations: depend only on the batch-tile index
                pl.BlockSpec((bt, d_in), lambda c, i: (i, 0)),
                # per-critic parameters (critic axis squeezed); index maps depend only on c
                # -> weights stay VMEM-resident across the inner batch axis
                pl.BlockSpec((None, d_in, h1), lambda c, i: (c, 0, 0)),
                pl.BlockSpec((None, 1, h1), lambda c, i: (c, 0, 0)),
                pl.BlockSpec((None, h1, h2), lambda c, i: (c, 0, 0)),
                pl.BlockSpec((None, 1, h2), lambda c, i: (c, 0, 0)),
                pl.BlockSpec((None, h2, h3), lambda c, i: (c, 0, 0)),
                pl.BlockSpec((None, 1, h3), lambda c, i: (c, 0, 0)),
                pl.BlockSpec((None, h3, q_pad), lambda c, i: (c, 0, 0)),
                pl.BlockSpec((None, 1, q_pad), lambda c, i: (c, 0, 0)),
            ],
            out_specs=pl.BlockSpec((None, bt, q_pad), lambda c, i: (c, i, 0)),
        ),
        compiler_params=pltpu.CompilerParams(
            # Every (c, i) block is independent (no carried accumulator): let both axes
            # shard across the two v7x TensorCores (no-op on single-TC v5e/v6e).
            dimension_semantics=("parallel", "parallel"),
            vmem_limit_bytes=vmem_limit),
    )(x, w1, b1, w2, b2, w3, b3, wo, bo)

    # Strip batch padding and the (<=7 column) quantile padding.  This slice is a small
    # copy only when padding exists; with q_pad==n_quantiles and b_pad==B it is free.
    return out[:, :B, :n_quantiles]


def _reference_forward_matched(states, actions, prepared_params, n_quantiles, act_dtype):
    """Plain-JAX reference following the kernel's exact dtype path (bf16 weights etc.)."""
    w1, b1, w2, b2, w3, b3, wo, bo = prepared_params
    wd = w1.dtype
    f32 = jnp.float32
    x = jnp.concatenate([states, actions], axis=-1).astype(wd)

    def hidden(v, w, b):
        h = jnp.dot(v.astype(wd), w, preferred_element_type=f32)
        h = h.astype(act_dtype) + b.astype(act_dtype)
        return jnp.maximum(h, 0.0)

    outs = []
    for c in range(w1.shape[0]):
        h = hidden(x, w1[c], b1[c])
        h = hidden(h, w2[c], b2[c])
        h = hidden(h, w3[c], b3[c])
        o = jnp.dot(h.astype(wd), wo[c], preferred_element_type=f32) + bo[c]
        outs.append(o[:, :n_quantiles].astype(f32))
    return jnp.stack(outs)


def _reference_forward_f32(states, actions, params):
    """Full-f32 reference built from the ORIGINAL (un-quantized) parameters."""
    w1, b1, w2, b2, w3, b3, wo, bo = params
    x = jnp.concatenate([states, actions], axis=-1).astype(jnp.float32)
    outs = []
    for c in range(w1.shape[0]):
        h = jnp.maximum(x @ w1[c] + b1[c], 0.0)
        h = jnp.maximum(h @ w2[c] + b2[c], 0.0)
        h = jnp.maximum(h @ w3[c] + b3[c], 0.0)
        outs.append(h @ wo[c] + bo[c])
    return jnp.stack(outs)


if __name__ == "__main__":
    # Small shapes consistent with feed_forward(state_dim, action_dim, ...).
    B = 24
    state_dim = 12
    action_dim = 4
    n_critics = 2
    n_quantiles = 2
    hidden_sizes = (128, 128, 128)   # scaled-down analogue of (512, 512, 512)

    key = jax.random.PRNGKey(0)
    k_s, k_a, k_p = jax.random.split(key, 3)
    states = jax.random.normal(k_s, (B, state_dim), jnp.float32)
    actions = jax.random.normal(k_a, (B, action_dim), jnp.float32)

    params = init_params(k_p, n_critics, state_dim + action_dim, hidden_sizes, n_quantiles)
    prepared = prepare_params(params)                 # one-time bf16 cast / 8-col pad
    act_dtype = _pick_act_dtype()

    # --- single batch-tile path ---
    out = quantile_ensemble_critics_forward(states, actions, prepared, n_quantiles,
                                            act_dtype=act_dtype)
    out = jax.block_until_ready(out)
    assert out.shape == (n_critics, B, n_quantiles), out.shape

    ref_m = _reference_forward_matched(states, actions, prepared, n_quantiles, act_dtype)
    ref_f = _reference_forward_f32(states, actions, params)
    err_m = float(jnp.max(jnp.abs(out - ref_m)))
    err_f = float(jnp.max(jnp.abs(out - ref_f)))
    assert jnp.allclose(out, ref_m, atol=2e-2, rtol=2e-2), err_m        # same-dtype path
    assert jnp.allclose(out, ref_f, atol=1e-1, rtol=1e-1), err_f        # true f32 module

    # --- multi batch-tile + padding path ---
    B2 = 300
    k_s2, k_a2 = jax.random.split(jax.random.PRNGKey(1))
    states2 = jax.random.normal(k_s2, (B2, state_dim), jnp.float32)
    actions2 = jax.random.normal(k_a2, (B2, action_dim), jnp.float32)
    out2 = quantile_ensemble_critics_forward(states2, actions2, prepared, n_quantiles,
                                             batch_tile=256, act_dtype=act_dtype)
    out2 = jax.block_until_ready(out2)
    assert out2.shape == (n_critics, B2, n_quantiles), out2.shape
    ref2_m = _reference_forward_matched(states2, actions2, prepared, n_quantiles, act_dtype)
    err2_m = float(jnp.max(jnp.abs(out2 - ref2_m)))
    assert jnp.allclose(out2, ref2_m, atol=2e-2, rtol=2e-2), err2_m

    print("KERNEL_OK")
</pallas_src>

<mosaic_0001>
module attributes {stable_mosaic.version = 11 : i64} {
  func.func @_critic_mlp_kernel(%arg0: i32, %arg1: i32, %arg2: memref<24x16xbf16, #tpu.memory_space<vmem>>, %arg3: memref<1x16x128xbf16, #tpu.memory_space<vmem>>, %arg4: memref<1x1x128xf32, #tpu.memory_space<vmem>>, %arg5: memref<1x128x128xbf16, #tpu.memory_space<vmem>>, %arg6: memref<1x1x128xf32, #tpu.memory_space<vmem>>, %arg7: memref<1x128x128xbf16, #tpu.memory_space<vmem>>, %arg8: memref<1x1x128xf32, #tpu.memory_space<vmem>>, %arg9: memref<1x128x8xbf16, #tpu.memory_space<vmem>>, %arg10: memref<1x1x8xf32, #tpu.memory_space<vmem>>, %arg11: memref<1x24x8xf32, #tpu.memory_space<vmem>>) attributes {dimension_semantics = [#tpu.dimension_semantics<parallel>, #tpu.dimension_semantics<parallel>], iteration_bounds = array<i64: 2, 1>, scalar_prefetch = 0 : i64, scratch_operands = 0 : i64, tpu.core_type = #tpu.core_type<tc>, window_params = [{transform_indices = @transform_0, window_bounds = array<i64: 24, 16>}, {transform_indices = @transform_1, window_bounds = array<i64: 1, 16, 128>}, {transform_indices = @transform_2, window_bounds = array<i64: 1, 1, 128>}, {transform_indices = @transform_3, window_bounds = array<i64: 1, 128, 128>}, {transform_indices = @transform_4, window_bounds = array<i64: 1, 1, 128>}, {transform_indices = @transform_5, window_bounds = array<i64: 1, 128, 128>}, {transform_indices = @transform_6, window_bounds = array<i64: 1, 1, 128>}, {transform_indices = @transform_7, window_bounds = array<i64: 1, 128, 8>}, {transform_indices = @transform_8, window_bounds = array<i64: 1, 1, 8>}, {transform_indices = @transform_9, window_bounds = array<i64: 1, 24, 8>}]} {
    %c0 = arith.constant 0 : index
    %c0_0 = arith.constant 0 : index
    %0 = vector.load %arg2[%c0, %c0_0] : memref<24x16xbf16, #tpu.memory_space<vmem>>, vector<24x16xbf16>
    %c0_1 = arith.constant 0 : index
    %c0_2 = arith.constant 0 : index
    %c0_3 = arith.constant 0 : index
    %1 = vector.load %arg3[%c0_1, %c0_2, %c0_3] : memref<1x16x128xbf16, #tpu.memory_space<vmem>>, vector<1x16x128xbf16>
    %2 = vector.shape_cast %1 : vector<1x16x128xbf16> to vector<16x128xbf16>
    %cst = arith.constant dense<0.000000e+00> : vector<24x128xf32>
    %3 = tpu.matmul %0, %2, %cst {dimension_numbers = #tpu.dot_dimension_numbers<[1], [0], [0], [1], [0, 0, 1, 1], [], []>} : vector<24x16xbf16>, vector<16x128xbf16>, vector<24x128xf32> -> vector<24x128xf32>
    %4 = arith.truncf %3 : vector<24x128xf32> to vector<24x128xbf16>
    %c0_4 = arith.constant 0 : index
    %c0_5 = arith.constant 0 : index
    %c0_6 = arith.constant 0 : index
    %5 = vector.load %arg4[%c0_4, %c0_5, %c0_6] : memref<1x1x128xf32, #tpu.memory_space<vmem>>, vector<1x1x128xf32>
    %6 = vector.shape_cast %5 : vector<1x1x128xf32> to vector<1x128xf32>
    %7 = arith.truncf %6 : vector<1x128xf32> to vector<1x128xbf16>
    %8 = vector.broadcast %7 : vector<1x128xbf16> to vector<24x128xbf16>
    %9 = arith.addf %4, %8 : vector<24x128xbf16>
    %cst_7 = arith.constant 0.000000e+00 : bf16
    %10 = vector.broadcast %cst_7 : bf16 to vector<24x128xbf16>
    %11 = arith.maximumf %9, %10 : vector<24x128xbf16>
    %c0_8 = arith.constant 0 : index
    %c0_9 = arith.constant 0 : index
    %c0_10 = arith.constant 0 : index
    %12 = vector.load %arg5[%c0_8, %c0_9, %c0_10] : memref<1x128x128xbf16, #tpu.memory_space<vmem>>, vector<1x128x128xbf16>
    %13 = vector.shape_cast %12 : vector<1x128x128xbf16> to vector<128x128xbf16>
    %cst_11 = arith.constant dense<0.000000e+00> : vector<24x128xf32>
    %14 = tpu.matmul %11, %13, %cst_11 {dimension_numbers = #tpu.dot_dimension_numbers<[1], [0], [0], [1], [0, 0, 1, 1], [], []>} : vector<24x128xbf16>, vector<128x128xbf16>, vector<24x128xf32> -> vector<24x128xf32>
    %15 = arith.truncf %14 : vector<24x128xf32> to vector<24x128xbf16>
    %c0_12 = arith.constant 0 : index
    %c0_13 = arith.constant 0 : index
    %c0_14 = arith.constant 0 : index
    %16 = vector.load %arg6[%c0_12, %c0_13, %c0_14] : memref<1x1x128xf32, #tpu.memory_space<vmem>>, vector<1x1x128xf32>
    %17 = vector.shape_cast %16 : vector<1x1x128xf32> to vector<1x128xf32>
    %18 = arith.truncf %17 : vector<1x128xf32> to vector<1x128xbf16>
    %19 = vector.broadcast %18 : vector<1x128xbf16> to vector<24x128xbf16>
    %20 = arith.addf %15, %19 : vector<24x128xbf16>
    %cst_15 = arith.constant 0.000000e+00 : bf16
    %21 = vector.broadcast %cst_15 : bf16 to vector<24x128xbf16>
    %22 = arith.maximumf %20, %21 : vector<24x128xbf16>
    %c0_16 = arith.constant 0 : index
    %c0_17 = arith.constant 0 : index
    %c0_18 = arith.constant 0 : index
    %23 = vector.load %arg7[%c0_16, %c0_17, %c0_18] : memref<1x128x128xbf16, #tpu.memory_space<vmem>>, vector<1x128x128xbf16>
    %24 = vector.shape_cast %23 : vector<1x128x128xbf16> to vector<128x128xbf16>
    %cst_19 = arith.constant dense<0.000000e+00> : vector<24x128xf32>
    %25 = tpu.matmul %22, %24, %cst_19 {dimension_numbers = #tpu.dot_dimension_numbers<[1], [0], [0], [1], [0, 0, 1, 1], [], []>} : vector<24x128xbf16>, vector<128x128xbf16>, vector<24x128xf32> -> vector<24x128xf32>
    %26 = arith.truncf %25 : vector<24x128xf32> to vector<24x128xbf16>
    %c0_20 = arith.constant 0 : index
    %c0_21 = arith.constant 0 : index
    %c0_22 = arith.constant 0 : index
    %27 = vector.load %arg8[%c0_20, %c0_21, %c0_22] : memref<1x1x128xf32, #tpu.memory_space<vmem>>, vector<1x1x128xf32>
    %28 = vector.shape_cast %27 : vector<1x1x128xf32> to vector<1x128xf32>
    %29 = arith.truncf %28 : vector<1x128xf32> to vector<1x128xbf16>
    %30 = vector.broadcast %29 : vector<1x128xbf16> to vector<24x128xbf16>
    %31 = arith.addf %26, %30 : vector<24x128xbf16>
    %cst_23 = arith.constant 0.000000e+00 : bf16
    %32 = vector.broadcast %cst_23 : bf16 to vector<24x128xbf16>
    %33 = arith.maximumf %31, %32 : vector<24x128xbf16>
    %c0_24 = arith.constant 0 : index
    %c0_25 = arith.constant 0 : index
    %c0_26 = arith.constant 0 : index
    %34 = vector.load %arg9[%c0_24, %c0_25, %c0_26] : memref<1x128x8xbf16, #tpu.memory_space<vmem>>, vector<1x128x8xbf16>
    %35 = vector.shape_cast %34 : vector<1x128x8xbf16> to vector<128x8xbf16>
    %cst_27 = arith.constant dense<0.000000e+00> : vector<24x8xf32>
    %36 = tpu.matmul %33, %35, %cst_27 {dimension_numbers = #tpu.dot_dimension_numbers<[1], [0], [0], [1], [0, 0, 1, 1], [], []>} : vector<24x128xbf16>, vector<128x8xbf16>, vector<24x8xf32> -> vector<24x8xf32>
    %c0_28 = arith.constant 0 : index
    %c0_29 = arith.constant 0 : index
    %c0_30 = arith.constant 0 : index
    %37 = vector.load %arg10[%c0_28, %c0_29, %c0_30] : memref<1x1x8xf32, #tpu.memory_space<vmem>>, vector<1x1x8xf32>
    %38 = vector.shape_cast %37 : vector<1x1x8xf32> to vector<1x8xf32>
    %39 = vector.broadcast %38 : vector<1x8xf32> to vector<24x8xf32>
    %40 = arith.addf %36, %39 : vector<24x8xf32>
    %c0_31 = arith.constant 0 : index
    %c0_32 = arith.constant 0 : index
    %c0_33 = arith.constant 0 : index
    %41 = vector.load %arg11[%c0_31, %c0_32, %c0_33] : memref<1x24x8xf32, #tpu.memory_space<vmem>>, vector<1x24x8xf32>
    %42 = vector.shape_cast %41 : vector<1x24x8xf32> to vector<24x8xf32>
    %43 = vector.shape_cast %40 : vector<24x8xf32> to vector<1x24x8xf32>
    tpu.vector_store %arg11[%c0_31, %c0_32, %c0_33], %43 {strides = array<i32>} : memref<1x24x8xf32, #tpu.memory_space<vmem>>, vector<1x24x8xf32>,
    return
  }
  func.func @transform_0(%arg0: i32, %arg1: i32) -> (i32, i32) {
    %c0_i32 = arith.constant 0 : i32
    %c0_i32_0 = arith.constant 0 : i32
    return %arg1, %c0_i32 : i32, i32
  }
  func.func @transform_1(%arg0: i32, %arg1: i32) -> (i32, i32, i32) {
    %c0_i32 = arith.constant 0 : i32
    %c0_i32_0 = arith.constant 0 : i32
    %c0_i32_1 = arith.constant 0 : i32
    return %arg0, %c0_i32, %c0_i32_0 : i32, i32, i32
  }
  func.func @transform_2(%arg0: i32, %arg1: i32) -> (i32, i32, i32) {
    %c0_i32 = arith.constant 0 : i32
    %c0_i32_0 = arith.constant 0 : i32
    %c0_i32_1 = arith.constant 0 : i32
    return %arg0, %c0_i32, %c0_i32_0 : i32, i32, i32
  }
  func.func @transform_3(%arg0: i32, %arg1: i32) -> (i32, i32, i32) {
    %c0_i32 = arith.constant 0 : i32
    %c0_i32_0 = arith.constant 0 : i32
    %c0_i32_1 = arith.constant 0 : i32
    return %arg0, %c0_i32, %c0_i32_0 : i32, i32, i32
  }
  func.func @transform_4(%arg0: i32, %arg1: i32) -> (i32, i32, i32) {
    %c0_i32 = arith.constant 0 : i32
    %c0_i32_0 = arith.constant 0 : i32
    %c0_i32_1 = arith.constant 0 : i32
    return %arg0, %c0_i32, %c0_i32_0 : i32, i32, i32
  }
  func.func @transform_5(%arg0: i32, %arg1: i32) -> (i32, i32, i32) {
    %c0_i32 = arith.constant 0 : i32
    %c0_i32_0 = arith.constant 0 : i32
    %c0_i32_1 = arith.constant 0 : i32
    return %arg0, %c0_i32, %c0_i32_0 : i32, i32, i32
  }
  func.func @transform_6(%arg0: i32, %arg1: i32) -> (i32, i32, i32) {
    %c0_i32 = arith.constant 0 : i32
    %c0_i32_0 = arith.constant 0 : i32
    %c0_i32_1 = arith.constant 0 : i32
    return %arg0, %c0_i32, %c0_i32_0 : i32, i32, i32
  }
  func.func @transform_7(%arg0: i32, %arg1: i32) -> (i32, i32, i32) {
    %c0_i32 = arith.constant 0 : i32
    %c0_i32_0 = arith.constant 0 : i32
    %c0_i32_1 = arith.constant 0 : i32
    return %arg0, %c0_i32, %c0_i32_0 : i32, i32, i32
  }
  func.func @transform_8(%arg0: i32, %arg1: i32) -> (i32, i32, i32) {
    %c0_i32 = arith.constant 0 : i32
    %c0_i32_0 = arith.constant 0 : i32
    %c0_i32_1 = arith.constant 0 : i32
    return %arg0, %c0_i32, %c0_i32_0 : i32, i32, i32
  }
  func.func @transform_9(%arg0: i32, %arg1: i32) -> (i32, i32, i32) {
    %c0_i32 = arith.constant 0 : i32
    %c0_i32_0 = arith.constant 0 : i32
    return %arg0, %arg1, %c0_i32 : i32, i32, i32
  }
}

</mosaic_0001>

<llo_original>
// kernel: tpu_custom_call.1
$region0: #{tpu_custom_call.1}
  #allocation0 [shape = 'u32[]', space=smem, size = 0x4, offset = 0x4, fixed_abs, tag = 'smem constant byte address 0x4 - core index']
  #allocation1 [shape = 'u32[144,128]{1,0:T(1,128)}', space=vmem, size = 0x12000, scoped, tag = 'internal scratch']
  %s0 = inlined_call_operand.vmem [shape: bf16[24,16], index: 0, kind: input, shape index: {}]
  %s1 = inlined_call_operand.vmem [shape: bf16[2,16,128], index: 1, kind: input, shape index: {}]
  %s2 = inlined_call_operand.vmem [shape: f32[2,1,128], index: 2, kind: input, shape index: {}]
  %s3 = inlined_call_operand.vmem [shape: bf16[2,128,128], index: 3, kind: input, shape index: {}]
  %s4 = inlined_call_operand.vmem [shape: f32[2,1,128], index: 4, kind: input, shape index: {}]
  %s5 = inlined_call_operand.hbm [shape: bf16[2,128,128], index: 5, kind: input, shape index: {}]
  %s6 = inlined_call_operand.vmem [shape: f32[2,1,128], index: 6, kind: input, shape index: {}]
  %s7 = inlined_call_operand.vmem [shape: bf16[2,128,8], index: 7, kind: input, shape index: {}]
  %s8 = inlined_call_operand.vmem [shape: f32[2,1,8], index: 8, kind: input, shape index: {}]
  %s9 = inlined_call_operand.vmem [shape: f32[2,24,8], index: 9, kind: output, shape index: {}]
  %s10 = sld [smem:[#allocation0]]
  $region73: #{tpu_custom_call.1} parent=0
    _
  %s12 = ssub.s32 1, %s10
  %s13 = scalar_select 0, %s12, %s10
  $region1: #{tpu_custom_call.1} parent=0
    #allocation2 [shape = 'u8[65536]{0}', space=vmem, size = 0x10000, scoped, tag = 'input window, operand 5']
    #allocation3 [shape = 's32[2]{0}', space=sflag, size = 0x8, scoped, tag = 'scoped memory for tpu_custom_call.1']
    %14 = vsyncpa [#allocation3], 0
    %s15 = scalar_lea.sflag [#allocation3], 1
    %16 = vsyncpa %s15, 0
    loop: start=0, step=1, limit=4
    $region2: #{tpu_custom_call.1} parent=1 // loop_pre_header
      _
    $region3: #{tpu_custom_call.1} parent=1 // loop_header
      %s18 = sphi 0, %s22
      %p19 = scmp.ge.s32.totalorder %s18, 4
      %s25 = sphi 0, %s37
      %s26 = sphi 0, %s33
      %s27 = sphi 0, %s25
      %s28 = sphi 0, %s26
      %s29 = sphi 0, %s27
      %s30 = sphi 0, %s28
      %s40 = sphi 0, %s42
      %s43 = sphi 0, %s40
      %s44 = sphi 0, %s43
      %s60 = sphi 0, %s44
      %s66 = sphi 0, %s68
      %s69 = sphi 0, %s66
      %s70 = sphi 0, %s69
      %s86 = sphi 0, %s70
      %s92 = sphi 0, %s94
      %s95 = sphi 0, %s92
      %s96 = sphi 0, %s95
      %s112 = sphi 0, %s96
      %s118 = sphi 0, %s120
      %s121 = sphi 0, %s118
      %s122 = sphi 0, %s121
      %s138 = sphi 0, %s122
      %s144 = sphi 0, %s146
      %s147 = sphi 0, %s144
      %s148 = sphi 0, %s147
      %s164 = sphi 0, %s148
      %s170 = sphi 0, %s172
      %s173 = sphi 0, %s170
      %s174 = sphi 0, %s173
      %s190 = sphi 0, %s174
      %s196 = sphi 0, %s198
      %s199 = sphi 0, %s196
      %s200 = sphi 0, %s199
      %s216 = sphi 0, %s200
      %s222 = sphi 0, %s224
      %s225 = sphi 0, %s222
      %s226 = sphi 0, %s225
      %s242 = sphi 0, %s226
      %s248 = sphi 0, %s250
      %s251 = sphi 0, %s248
      %s252 = sphi 0, %s251
      %s268 = sphi 0, %s252
      %s276 = sphi 0, %s278
      %s279 = sphi 0, %s276
      %s280 = sphi 0, %s279
      %s296 = sphi 0, %s280
    $region4: #{tpu_custom_call.1} parent=1 // loop_header_branch
      %21 = sbr.rel (%p19) target = $region8
    $region5: #{tpu_custom_call.1} parent=1 // loop_body
      %s23 = ssub.s32 %s18, 1
      %s24 = ssub.s32 %s18, 2
      %s31 = sadd.s32 1, %s26
      %p32 = scmp.ge.s32.totalorder %s31, 1
      %s33 = scalar_select %p32, 0, %s31
      %s34 = sadd.s32 1, %s25
      %s35 = scalar_select %p32, %s34, %s25
      %p36 = scmp.ge.s32.totalorder %s35, 2
      %s37 = scalar_select %p36, 0, %s35
      %s38 = ssub.s32 %s26, %s33
      %p39 = scmp.eq.s32.totalorder %s38, 0
      %s41 = sadd.s32 %s40, 1
      %s42 = scalar_select %p39, %s40, %s41
      %p45 = pneg %p39
      %p46 = scmp.eq.s32.totalorder %s18, 1
      %p47 = por %p45, %p46
      %p48 = scmp.ne.s32.totalorder %s40, %s43
      %p49 = scmp.eq.s32.totalorder %s18, 0
      %p50 = por %p48, %p49
      %p51 = scmp.ne.s32.totalorder %s40, %s43
      %p52 = scmp.eq.s32.totalorder %s23, 1
      %p53 = por %p51, %p52
      %p54 = scmp.ne.s32.totalorder %s43, %s44
      %p55 = scmp.eq.s32.totalorder %s23, 0
      %p56 = por %p54, %p55
      %p57 = scmp.ne.s32.totalorder %s43, %s44
      %p58 = scmp.eq.s32.totalorder %s24, 1
      %p59 = por %p57, %p58
      %p61 = scmp.ne.s32.totalorder %s44, %s60
      %p62 = scmp.eq.s32.totalorder %s24, 0
      %p63 = por %p61, %p62
      %s64 = ssub.s32 %s25, %s37
      %p65 = scmp.eq.s32.totalorder %s64, 0
      %s67 = sadd.s32 %s66, 1
      %s68 = scalar_select %p65, %s66, %s67
      %p71 = pneg %p65
      %p72 = scmp.eq.s32.totalorder %s18, 1
      %p73 = por %p71, %p72
      %p74 = scmp.ne.s32.totalorder %s66, %s69
      %p75 = scmp.eq.s32.totalorder %s18, 0
      %p76 = por %p74, %p75
      %p77 = scmp.ne.s32.totalorder %s66, %s69
      %p78 = scmp.eq.s32.totalorder %s23, 1
      %p79 = por %p77, %p78
      %p80 = scmp.ne.s32.totalorder %s69, %s70
      %p81 = scmp.eq.s32.totalorder %s23, 0
      %p82 = por %p80, %p81
      %p83 = scmp.ne.s32.totalorder %s69, %s70
      %p84 = scmp.eq.s32.totalorder %s24, 1
      %p85 = por %p83, %p84
      %p87 = scmp.ne.s32.totalorder %s70, %s86
      %p88 = scmp.eq.s32.totalorder %s24, 0
      %p89 = por %p87, %p88
      %s90 = ssub.s32 %s25, %s37
      %p91 = scmp.eq.s32.totalorder %s90, 0
      %s93 = sadd.s32 %s92, 1
      %s94 = scalar_select %p91, %s92, %s93
      %p97 = pneg %p91
      %p98 = scmp.eq.s32.totalorder %s18, 1
      %p99 = por %p97, %p98
      %p100 = scmp.ne.s32.totalorder %s92, %s95
      %p101 = scmp.eq.s32.totalorder %s18, 0
      %p102 = por %p100, %p101
      %p103 = scmp.ne.s32.totalorder %s92, %s95
      %p104 = scmp.eq.s32.totalorder %s23, 1
      %p105 = por %p103, %p104
      %p106 = scmp.ne.s32.totalorder %s95, %s96
      %p107 = scmp.eq.s32.totalorder %s23, 0
      %p108 = por %p106, %p107
      %p109 = scmp.ne.s32.totalorder %s95, %s96
      %p110 = scmp.eq.s32.totalorder %s24, 1
      %p111 = por %p109, %p110
      %p113 = scmp.ne.s32.totalorder %s96, %s112
      %p114 = scmp.eq.s32.totalorder %s24, 0
      %p115 = por %p113, %p114
      %s116 = ssub.s32 %s25, %s37
      %p117 = scmp.eq.s32.totalorder %s116, 0
      %s119 = sadd.s32 %s118, 1
      %s120 = scalar_select %p117, %s118, %s119
      %p123 = pneg %p117
      %p124 = scmp.eq.s32.totalorder %s18, 1
      %p125 = por %p123, %p124
      %p126 = scmp.ne.s32.totalorder %s118, %s121
      %p127 = scmp.eq.s32.totalorder %s18, 0
      %p128 = por %p126, %p127
      %p129 = scmp.ne.s32.totalorder %s118, %s121
      %p130 = scmp.eq.s32.totalorder %s23, 1
      %p131 = por %p129, %p130
      %p132 = scmp.ne.s32.totalorder %s121, %s122
      %p133 = scmp.eq.s32.totalorder %s23, 0
      %p134 = por %p132, %p133
      %p135 = scmp.ne.s32.totalorder %s121, %s122
      %p136 = scmp.eq.s32.totalorder %s24, 1
      %p137 = por %p135, %p136
      %p139 = scmp.ne.s32.totalorder %s122, %s138
      %p140 = scmp.eq.s32.totalorder %s24, 0
      %p141 = por %p139, %p140
      %s142 = ssub.s32 %s25, %s37
      %p143 = scmp.eq.s32.totalorder %s142, 0
      %s145 = sadd.s32 %s144, 1
      %s146 = scalar_select %p143, %s144, %s145
      %p149 = pneg %p143
      %p150 = scmp.eq.s32.totalorder %s18, 1
      %p151 = por %p149, %p150
      %p152 = scmp.ne.s32.totalorder %s144, %s147
      %p153 = scmp.eq.s32.totalorder %s18, 0
      %p154 = por %p152, %p153
      %p155 = scmp.ne.s32.totalorder %s144, %s147
      %p156 = scmp.eq.s32.totalorder %s23, 1
      %p157 = por %p155, %p156
      %p158 = scmp.ne.s32.totalorder %s147, %s148
      %p159 = scmp.eq.s32.totalorder %s23, 0
      %p160 = por %p158, %p159
      %p161 = scmp.ne.s32.totalorder %s147, %s148
      %p162 = scmp.eq.s32.totalorder %s24, 1
      %p163 = por %p161, %p162
      %p165 = scmp.ne.s32.totalorder %s148, %s164
      %p166 = scmp.eq.s32.totalorder %s24, 0
      %p167 = por %p165, %p166
      %s168 = ssub.s32 %s25, %s37
      %p169 = scmp.eq.s32.totalorder %s168, 0
      %s171 = sadd.s32 %s170, 1
      %s172 = scalar_select %p169, %s170, %s171
      %p175 = pneg %p169
      %p176 = scmp.eq.s32.totalorder %s18, 1
      %p177 = por %p175, %p176
      %p178 = scmp.ne.s32.totalorder %s170, %s173
      %p179 = scmp.eq.s32.totalorder %s18, 0
      %p180 = por %p178, %p179
      %p181 = scmp.ne.s32.totalorder %s170, %s173
      %p182 = scmp.eq.s32.totalorder %s23, 1
      %p183 = por %p181, %p182
      %p184 = scmp.ne.s32.totalorder %s173, %s174
      %p185 = scmp.eq.s32.totalorder %s23, 0
      %p186 = por %p184, %p185
      %p187 = scmp.ne.s32.totalorder %s173, %s174
      %p188 = scmp.eq.s32.totalorder %s24, 1
      %p189 = por %p187, %p188
      %p191 = scmp.ne.s32.totalorder %s174, %s190
      %p192 = scmp.eq.s32.totalorder %s24, 0
      %p193 = por %p191, %p192
      %s194 = ssub.s32 %s25, %s37
      %p195 = scmp.eq.s32.totalorder %s194, 0
      %s197 = sadd.s32 %s196, 1
      %s198 = scalar_select %p195, %s196, %s197
      %p201 = pneg %p195
      %p202 = scmp.eq.s32.totalorder %s18, 1
      %p203 = por %p201, %p202
      %p204 = scmp.ne.s32.totalorder %s196, %s199
      %p205 = scmp.eq.s32.totalorder %s18, 0
      %p206 = por %p204, %p205
      %p207 = scmp.ne.s32.totalorder %s196, %s199
      %p208 = scmp.eq.s32.totalorder %s23, 1
      %p209 = por %p207, %p208
      %p210 = scmp.ne.s32.totalorder %s199, %s200
      %p211 = scmp.eq.s32.totalorder %s23, 0
      %p212 = por %p210, %p211
      %p213 = scmp.ne.s32.totalorder %s199, %s200
      %p214 = scmp.eq.s32.totalorder %s24, 1
      %p215 = por %p213, %p214
      %p217 = scmp.ne.s32.totalorder %s200, %s216
      %p218 = scmp.eq.s32.totalorder %s24, 0
      %p219 = por %p217, %p218
      %s220 = ssub.s32 %s25, %s37
      %p221 = scmp.eq.s32.totalorder %s220, 0
      %s223 = sadd.s32 %s222, 1
      %s224 = scalar_select %p221, %s222, %s223
      %p227 = pneg %p221
      %p228 = scmp.eq.s32.totalorder %s18, 1
      %p229 = por %p227, %p228
      %p230 = scmp.ne.s32.totalorder %s222, %s225
      %p231 = scmp.eq.s32.totalorder %s18, 0
      %p232 = por %p230, %p231
      %p233 = scmp.ne.s32.totalorder %s222, %s225
      %p234 = scmp.eq.s32.totalorder %s23, 1
      %p235 = por %p233, %p234
      %p236 = scmp.ne.s32.totalorder %s225, %s226
      %p237 = scmp.eq.s32.totalorder %s23, 0
      %p238 = por %p236, %p237
      %p239 = scmp.ne.s32.totalorder %s225, %s226
      %p240 = scmp.eq.s32.totalorder %s24, 1
      %p241 = por %p239, %p240
      %p243 = scmp.ne.s32.totalorder %s226, %s242
      %p244 = scmp.eq.s32.totalorder %s24, 0
      %p245 = por %p243, %p244
      %s246 = ssub.s32 %s25, %s37
      %p247 = scmp.eq.s32.totalorder %s246, 0
      %s249 = sadd.s32 %s248, 1
      %s250 = scalar_select %p247, %s248, %s249
      %p253 = pneg %p247
      %p254 = scmp.eq.s32.totalorder %s18, 1
      %p255 = por %p253, %p254
      %p256 = scmp.ne.s32.totalorder %s248, %s251
      %p257 = scmp.eq.s32.totalorder %s18, 0
      %p258 = por %p256, %p257
      %p259 = scmp.ne.s32.totalorder %s248, %s251
      %p260 = scmp.eq.s32.totalorder %s23, 1
      %p261 = por %p259, %p260
      %p262 = scmp.ne.s32.totalorder %s251, %s252
      %p263 = scmp.eq.s32.totalorder %s23, 0
      %p264 = por %p262, %p263
      %p265 = scmp.ne.s32.totalorder %s251, %s252
      %p266 = scmp.eq.s32.totalorder %s24, 1
      %p267 = por %p265, %p266
      %p269 = scmp.ne.s32.totalorder %s252, %s268
      %p270 = scmp.eq.s32.totalorder %s24, 0
      %p271 = por %p269, %p270
      %s272 = ssub.s32 %s25, %s37
      %s273 = ssub.s32 %s26, %s33
      %s274 = sor.u32 %s272, %s273
      %p275 = scmp.eq.s32.totalorder %s274, 0
      %s277 = sadd.s32 %s276, 1
      %s278 = scalar_select %p275, %s276, %s277
      %p281 = pneg %p275
      %p282 = scmp.eq.s32.totalorder %s18, 1
      %p283 = por %p281, %p282
      %p284 = scmp.ne.s32.totalorder %s276, %s279
      %p285 = scmp.eq.s32.totalorder %s18, 0
      %p286 = por %p284, %p285
      %p287 = scmp.ne.s32.totalorder %s276, %s279
      %p288 = scmp.eq.s32.totalorder %s23, 1
      %p289 = por %p287, %p288
      %p290 = scmp.ne.s32.totalorder %s279, %s280
      %p291 = scmp.eq.s32.totalorder %s23, 0
      %p292 = por %p290, %p291
      %p293 = scmp.ne.s32.totalorder %s279, %s280
      %p294 = scmp.eq.s32.totalorder %s24, 1
      %p295 = por %p293, %p294
      %p297 = scmp.ne.s32.totalorder %s280, %s296
      %p298 = scmp.eq.s32.totalorder %s24, 0
      %p299 = por %p297, %p298
      %p300 = scmp.le.s32.totalorder 1, %s18
      %p301 = scmp.lt.s32.totalorder %s18, 3
      %p302 = pnand %p300, %p301
      %p303 = pneg %p302
      // Predicated region
      $region9: #{tpu_custom_call.1} parent=5 // pred_check
        _
      $region10: #{tpu_custom_call.1} parent=5 // pred_check_branch
        %305 = sbr.rel (%p302) target = $region12
      $region11: #{tpu_custom_call.1} parent=5 // pred_region
        %s306 = ssub.s32 %s18, 1
        // Predicated region
        $region13: #{tpu_custom_call.1} parent=11 // pred_check
          %p307 = pneg %p56
        $region14: #{tpu_custom_call.1} parent=11 // pred_check_branch
          %309 = sbr.rel (%p307) target = $region16
        $region15: #{tpu_custom_call.1} parent=11 // pred_region
          %s310 = smul.u32 3, %s28
          %p311 = scmp.lt.s32.totalorder %s310, 2
          %s312 = scalar_select %p311, %s310, 2
          %s313 = smul.addr %s312, 4
          %s314 = scalar_lea.vmem %s0, %s313
          %s315 = smul.u32 3, %s28
        $region16: #{tpu_custom_call.1} parent=11 // pred_fallthru
          _
      $region12: #{tpu_custom_call.1} parent=5 // pred_fallthru
        _
      %p316 = scmp.lt.s32.totalorder %s18, 2
      // Predicated region
      $region17: #{tpu_custom_call.1} parent=5 // pred_check
        %p317 = pneg %p316
      $region18: #{tpu_custom_call.1} parent=5 // pred_check_branch
        %319 = sbr.rel (%p317) target = $region20
      $region19: #{tpu_custom_call.1} parent=5 // pred_region
        // Predicated region
        $region21: #{tpu_custom_call.1} parent=19 // pred_check
          %p320 = pneg %p76
        $region22: #{tpu_custom_call.1} parent=19 // pred_check_branch
          %322 = sbr.rel (%p320) target = $region24
        $region23: #{tpu_custom_call.1} parent=19 // pred_region
          %p323 = scmp.lt.s32.totalorder %s25, 1
          %s324 = scalar_select %p323, %s25, 1
          %s325 = smul.addr %s324, 2
          %s326 = smul.addr %s325, 4
          %s327 = scalar_lea.vmem %s1, %s326
        $region24: #{tpu_custom_call.1} parent=19 // pred_fallthru
          _
        // Predicated region
        $region25: #{tpu_custom_call.1} parent=19 // pred_check
          %p328 = pneg %p102
        $region26: #{tpu_custom_call.1} parent=19 // pred_check_branch
          %330 = sbr.rel (%p328) target = $region28
        $region27: #{tpu_custom_call.1} parent=19 // pred_region
          %p331 = scmp.lt.s32.totalorder %s25, 1
          %s332 = scalar_select %p331, %s25, 1
          %s333 = scalar_lea.vmem %s2, %s332
        $region28: #{tpu_custom_call.1} parent=19 // pred_fallthru
          _
        // Predicated region
        $region29: #{tpu_custom_call.1} parent=19 // pred_check
          %p334 = pneg %p128
        $region30: #{tpu_custom_call.1} parent=19 // pred_check_branch
          %336 = sbr.rel (%p334) target = $region32
        $region31: #{tpu_custom_call.1} parent=19 // pred_region
          %p337 = scmp.lt.s32.totalorder %s25, 1
          %s338 = scalar_select %p337, %s25, 1
          %s339 = smul.addr %s338, 16
          %s340 = smul.addr %s339, 4
          %s341 = scalar_lea.vmem %s3, %s340
        $region32: #{tpu_custom_call.1} parent=19 // pred_fallthru
          _
        // Predicated region
        $region33: #{tpu_custom_call.1} parent=19 // pred_check
          %p342 = pneg %p154
        $region34: #{tpu_custom_call.1} parent=19 // pred_check_branch
          %344 = sbr.rel (%p342) target = $region36
        $region35: #{tpu_custom_call.1} parent=19 // pred_region
          %p345 = scmp.lt.s32.totalorder %s25, 1
          %s346 = scalar_select %p345, %s25, 1
          %s347 = scalar_lea.vmem %s4, %s346
        $region36: #{tpu_custom_call.1} parent=19 // pred_fallthru
          _
        // Predicated region
        $region37: #{tpu_custom_call.1} parent=19 // pred_check
          %p348 = pneg %p180
        $region38: #{tpu_custom_call.1} parent=19 // pred_check_branch
          %350 = sbr.rel (%p348) target = $region40
        $region39: #{tpu_custom_call.1} parent=19 // pred_region
          %s351 = sand.u32 %s170, 1
          %s352 = scalar_lea.sflag [#allocation3], %s351
          %s353 = sand.u32 %s170, 1
          %s354 = smul.addr %s353, 64
          %s355 = scalar_lea.vmem [#allocation2], %s354
          %s357 = ssub.s32 1024, 1024
          %358 = vsyncadd %s352, %s357
          %s359 = smul.addr %s25, 16
          %s360 = smul.addr %s359, 64
          %s361 = scalar_lea.hbm %s5, %s360
          %s362 = sshll.u32 %s355, 4
          %s363 = int_to_ptr.vmem [resolvable:$true] %s362
          %368 = dma.hbm_to_vmem [thread:$0]  %s361, 1024, %s363, %s352, 64, 64, 4
        $region40: #{tpu_custom_call.1} parent=19 // pred_fallthru
          _
        // Predicated region
        $region41: #{tpu_custom_call.1} parent=19 // pred_check
          %p369 = pneg %p206
        $region42: #{tpu_custom_call.1} parent=19 // pred_check_branch
          %371 = sbr.rel (%p369) target = $region44
        $region43: #{tpu_custom_call.1} parent=19 // pred_region
          %p372 = scmp.lt.s32.totalorder %s25, 1
          %s373 = scalar_select %p372, %s25, 1
          %s374 = scalar_lea.vmem %s6, %s373
        $region44: #{tpu_custom_call.1} parent=19 // pred_fallthru
          _
        // Predicated region
        $region45: #{tpu_custom_call.1} parent=19 // pred_check
          %p375 = pneg %p232
        $region46: #{tpu_custom_call.1} parent=19 // pred_check_branch
          %377 = sbr.rel (%p375) target = $region48
        $region47: #{tpu_custom_call.1} parent=19 // pred_region
          %p378 = scmp.lt.s32.totalorder %s25, 1
          %s379 = scalar_select %p378, %s25, 1
          %s380 = smul.addr %s379, 16
          %s381 = smul.addr %s380, 4
          %s382 = scalar_lea.vmem %s7, %s381
        $region48: #{tpu_custom_call.1} parent=19 // pred_fallthru
          _
        // Predicated region
        $region49: #{tpu_custom_call.1} parent=19 // pred_check
          %p383 = pneg %p258
        $region50: #{tpu_custom_call.1} parent=19 // pred_check_branch
          %385 = sbr.rel (%p383) target = $region52
        $region51: #{tpu_custom_call.1} parent=19 // pred_region
          %p386 = scmp.lt.s32.totalorder %s25, 1
          %s387 = scalar_select %p386, %s25, 1
          %s388 = scalar_lea.vmem %s8, %s387
        $region52: #{tpu_custom_call.1} parent=19 // pred_fallthru
          _
      $region20: #{tpu_custom_call.1} parent=5 // pred_fallthru
        _
      %p389 = scmp.le.s32.totalorder 1, %s18
      %p390 = scmp.lt.s32.totalorder %s18, 3
      %p391 = pnand %p389, %p390
      %p392 = pneg %p391
      // Predicated region
      $region53: #{tpu_custom_call.1} parent=5 // pred_check
        _
      $region54: #{tpu_custom_call.1} parent=5 // pred_check_branch
        %394 = sbr.rel (%p391) target = $region56
      $region55: #{tpu_custom_call.1} parent=5 // pred_region
        %s395 = ssub.s32 %s18, 1
        %s396 = sand.u32 %s173, 1
        %s397 = scalar_lea.sflag [#allocation3], %s396
        %s398 = sand.u32 %s173, 1
        %s399 = smul.addr %s398, 64
        %s400 = scalar_lea.vmem [#allocation2], %s399
        // Predicated region
        $region57: #{tpu_custom_call.1} parent=55 // pred_check
          %p401 = pneg %p186
        $region58: #{tpu_custom_call.1} parent=55 // pred_check_branch
          %403 = sbr.rel (%p401) target = $region60
        $region59: #{tpu_custom_call.1} parent=55 // pred_region
          %404 = dma.done %s397, 1024
        $region60: #{tpu_custom_call.1} parent=55 // pred_fallthru
          _
        %s405 = smul.u32 3, %s28
        %p406 = scmp.lt.s32.totalorder %s405, 2
        %s407 = scalar_select %p406, %s405, 2
        %s408 = smul.addr %s407, 4
        %s409 = scalar_lea.vmem %s0, %s408
        %p410 = pneg %p56
        %p411 = pneg %p53
        %p412 = scmp.lt.s32.totalorder %s27, 1
        %s413 = scalar_select %p412, %s27, 1
        %s414 = smul.addr %s413, 2
        %s415 = smul.addr %s414, 4
        %s416 = scalar_lea.vmem %s1, %s415
        %p417 = pneg %p82
        %p418 = pneg %p79
        %p419 = scmp.lt.s32.totalorder %s27, 1
        %s420 = scalar_select %p419, %s27, 1
        %s421 = scalar_lea.vmem %s2, %s420
        %p422 = pneg %p108
        %p423 = pneg %p105
        %p424 = scmp.lt.s32.totalorder %s27, 1
        %s425 = scalar_select %p424, %s27, 1
        %s426 = smul.addr %s425, 16
        %s427 = smul.addr %s426, 4
        %s428 = scalar_lea.vmem %s3, %s427
        %p429 = pneg %p134
        %p430 = pneg %p131
        %p431 = scmp.lt.s32.totalorder %s27, 1
        %s432 = scalar_select %p431, %s27, 1
        %s433 = scalar_lea.vmem %s4, %s432
        %p434 = pneg %p160
        %p435 = pneg %p157
        %s436 = sand.u32 %s173, 1
        %s437 = scalar_lea.sflag [#allocation3], %s436
        %s438 = sand.u32 %s173, 1
        %s439 = smul.addr %s438, 64
        %s440 = scalar_lea.vmem [#allocation2], %s439
        %p441 = pneg %p186
        %p442 = pneg %p183
        %p443 = scmp.lt.s32.totalorder %s27, 1
        %s444 = scalar_select %p443, %s27, 1
        %s445 = scalar_lea.vmem %s6, %s444
        %p446 = pneg %p212
        %p447 = pneg %p209
        %p448 = scmp.lt.s32.totalorder %s27, 1
        %s449 = scalar_select %p448, %s27, 1
        %s450 = smul.addr %s449, 16
        %s451 = smul.addr %s450, 4
        %s452 = scalar_lea.vmem %s7, %s451
        %p453 = pneg %p238
        %p454 = pneg %p235
        %p455 = scmp.lt.s32.totalorder %s27, 1
        %s456 = scalar_select %p455, %s27, 1
        %s457 = scalar_lea.vmem %s8, %s456
        %p458 = pneg %p264
        %p459 = pneg %p261
        %p460 = pneg %p292
        %p461 = pneg %p289
        %s462 = smul.u32 3, %s28
        %p463 = scmp.lt.s32.totalorder %s27, 1
        %s464 = scalar_select %p463, %s27, 1
        %p465 = scmp.lt.s32.totalorder %s462, 2
        %s466 = scalar_select %p465, %s462, 2
        %s467 = smul.addr %s464, 3
        %s468 = sadd.s32 %s466, %s467
        %s469 = smul.addr %s468, 8
        %s470 = scalar_lea.vmem %s9, %s469
        %s471 = smul.u32 3, %s28
        %p472 = scmp.lt.s32.totalorder %s471, 2
        %s473 = scalar_select %p472, %s471, 2
        %s474 = smul.addr %s473, 4
        %s475 = scalar_lea.vmem %s0, %s474
        %s476 = smul.u32 3, %s28
        %p477 = scmp.lt.s32.totalorder %s27, 1
        %s478 = scalar_select %p477, %s27, 1
        %s479 = smul.addr %s478, 2
        %s480 = smul.addr %s479, 4
        %s481 = scalar_lea.vmem %s1, %s480
        %p482 = scmp.lt.s32.totalorder %s27, 1
        %s483 = scalar_select %p482, %s27, 1
        %s484 = scalar_lea.vmem %s2, %s483
        %p485 = scmp.lt.s32.totalorder %s27, 1
        %s486 = scalar_select %p485, %s27, 1
        %s487 = smul.addr %s486, 16
        %s488 = smul.addr %s487, 4
        %s489 = scalar_lea.vmem %s3, %s488
        %p490 = scmp.lt.s32.totalorder %s27, 1
        %s491 = scalar_select %p490, %s27, 1
        %s492 = scalar_lea.vmem %s4, %s491
        %p493 = scmp.lt.s32.totalorder %s27, 1
        %s494 = scalar_select %p493, %s27, 1
        %s495 = scalar_lea.vmem %s6, %s494
        %p496 = scmp.lt.s32.totalorder %s27, 1
        %s497 = scalar_select %p496, %s27, 1
        %s498 = smul.addr %s497, 16
        %s499 = smul.addr %s498, 4
        %s500 = scalar_lea.vmem %s7, %s499
        %p501 = scmp.lt.s32.totalorder %s27, 1
        %s502 = scalar_select %p501, %s27, 1
        %s503 = scalar_lea.vmem %s8, %s502
        %s504 = smul.u32 3, %s28
        %p505 = scmp.lt.s32.totalorder %s27, 1
        %s506 = scalar_select %p505, %s27, 1
        %p507 = scmp.lt.s32.totalorder %s504, 2
        %s508 = scalar_select %p507, %s504, 2
        %s509 = smul.addr %s506, 3
        %s510 = sadd.s32 %s508, %s509
        %s511 = smul.addr %s510, 8
        %s512 = scalar_lea.vmem %s9, %s511
        %s513 = smul.u32 3, %s28
        %v515 = vld [vmem:[%s475] sm:$0xf]
        %v516 = vld [vmem:[%s475 + $0x4] sm:$0xf]
        %v517 = vld [vmem:[%s475 + $0x8] sm:$0xf]
        %v518 = vld [vmem:[%s481] sm:$0xf]
        %v519 = vld [vmem:[%s481 + $0x4] sm:$0xf]
        %v523 = vunpack.c.l.b16 %v515
        %v524 = vunpack.c.l.b16 %v516
        %v525 = vunpack.c.l.b16 %v517
        %v526 = vpack.c.b16 %v524, %v523
        %v527 = vpack.c.b16 %v525, %v525
        %v530 = vunpack.c.l.b16 %v518
        %v531 = vunpack.c.l.b16 %v519
        %v532 = vpack.c.b16 %v531, %v530
        %vm534 = vcmask 130048
        %v536 = vsel %vm534, %v526, 0
        %v539 = vsel %vm534, %v527, 0
        %541 = vmatprep.subr.bf16.mxu0 0
        %542 = vmatpush1.bf16.msra.mxu0 %v532
        %543 = vmatprep.subr.bf16.mxu0 0
        %544 = vmatpush1.bf16.msra.mxu0 0
        %545 = vmatprep.subr.bf16.mxu0 0
        %546 = vmatpush1.bf16.msra.mxu0 0
        %547 = vmatprep.subr.bf16.mxu0 0
        %548 = vmatpush1.bf16.msra.mxu0 0
        %549 = vmatprep.subr.bf16.mxu0 0
        %550 = vmatpush1.bf16.msra.mxu0 0
        %551 = vmatprep.subr.bf16.mxu0 0
        %552 = vmatpush1.bf16.msra.mxu0 0
        %553 = vmatprep.subr.bf16.mxu0 0
        %554 = vmatpush1.bf16.msra.mxu0 0
        %555 = vmatprep.subr.bf16.mxu0 0
        %556 = vmatpush1.bf16.msra.mxu0 0
        %557 = vmatprep.subr.bf16.mxu0 0
        %558 = vmatpush1.bf16.msra.mxu0 0
        %559 = vmatprep.subr.bf16.mxu0 0
        %560 = vmatpush1.bf16.msra.mxu0 0
        %561 = vmatprep.subr.bf16.mxu0 0
        %562 = vmatpush1.bf16.msra.mxu0 0
        %563 = vmatprep.subr.bf16.mxu0 0
        %564 = vmatpush1.bf16.msra.mxu0 0
        %565 = vmatprep.subr.bf16.mxu0 0
        %566 = vmatpush1.bf16.msra.mxu0 0
        %567 = vmatprep.subr.bf16.mxu0 0
        %568 = vmatpush1.bf16.msra.mxu0 0
        %569 = vmatprep.subr.bf16.mxu0 0
        %570 = vmatpush1.bf16.msra.mxu0 0
        %571 = vmatprep.subr.bf16.mxu0 0
        %572 = vmatpush1.bf16.msra.mxu0 0
        %573 = vmatprep.mubr.bf16.mxu0 0
        %574 = vmatmul.mubr.bf16.gmra.mrb[0].mxu0 %v536
        %v575 = vpop.f32.mrb[0].mxu0
        %v576 = vadd.f32 0.0, %v575
        %v577 = vpop.f32.mrb[0].mxu0
        %v578 = vpop.f32.mrb[0].mxu0
        %v579 = vadd.f32 0.0, %v578
        %v580 = vpop.f32.mrb[0].mxu0
        %581 = vmatprep.mubr.bf16.mxu0 0
        %582 = vmatmul.mubr.bf16.gmra.mrb[0].mxu0 %v539
        %v583 = vpop.f32.mrb[0].mxu0
        %v584 = vadd.f32 0.0, %v583
        %v585 = vpop.f32.mrb[0].mxu0
        %v586 = vpop.f32.mrb[0].mxu0
        %v587 = vpop.f32.mrb[0].mxu0
        %588 = vdwg.mxu0
        %v589 = vpack.c.bf16 %v579, %v576
        %v590 = vpack.c.bf16 %v584, %v584
        %v591 = vld [vmem:[%s484] sm:$0x1]
        %v592 = vpack.c.bf16 %v591, %v591
        %v594 = vpack.i.b16 %v592, %v592
        %v596 = vlaneseq
        %v597 = vshrl.u32 %v596, 7
        %v598 = vsub.s32 0, %v597
        %v599 = vrot.slane %v594, %v598
        %v600 = vadd.bf16 %v589, %v599
        %v601 = vadd.bf16 %v590, %v599
        %v602 = vmax.bf16 %v600, 0
        %v603 = vmax.bf16 %v601, 0
        %v604 = vld [vmem:[%s489] sm:$0xf]
        %v605 = vld [vmem:[%s489 + $0x4] sm:$0xf]
        %v606 = vld [vmem:[%s489 + $0x8] sm:$0xf]
        %v607 = vld [vmem:[%s489 + $0xc] sm:$0xf]
        %v608 = vld [vmem:[%s489 + $0x10] sm:$0xf]
        %v609 = vld [vmem:[%s489 + $0x14] sm:$0xf]
        %v610 = vld [vmem:[%s489 + $0x18] sm:$0xf]
        %v611 = vld [vmem:[%s489 + $0x1c] sm:$0xf]
        %v612 = vld [vmem:[%s489 + $0x20] sm:$0xf]
        %v613 = vld [vmem:[%s489 + $0x24] sm:$0xf]
        %v614 = vld [vmem:[%s489 + $0x28] sm:$0xf]
        %v615 = vld [vmem:[%s489 + $0x2c] sm:$0xf]
        %v616 = vld [vmem:[%s489 + $0x30] sm:$0xf]
        %v617 = vld [vmem:[%s489 + $0x34] sm:$0xf]
        %v618 = vld [vmem:[%s489 + $0x38] sm:$0xf]
        %v619 = vld [vmem:[%s489 + $0x3c] sm:$0xf]
        %v636 = vunpack.c.l.b16 %v604
        %v637 = vunpack.c.l.b16 %v605
        %v638 = vunpack.c.l.b16 %v606
        %v639 = vunpack.c.l.b16 %v607
        %v640 = vunpack.c.l.b16 %v608
        %v641 = vunpack.c.l.b16 %v609
        %v642 = vunpack.c.l.b16 %v610
        %v643 = vunpack.c.l.b16 %v611
        %v644 = vunpack.c.l.b16 %v612
        %v645 = vunpack.c.l.b16 %v613
        %v646 = vunpack.c.l.b16 %v614
        %v647 = vunpack.c.l.b16 %v615
        %v648 = vunpack.c.l.b16 %v616
        %v649 = vunpack.c.l.b16 %v617
        %v650 = vunpack.c.l.b16 %v618
        %v651 = vunpack.c.l.b16 %v619
        %v652 = vpack.c.b16 %v637, %v636
        %v653 = vpack.c.b16 %v639, %v638
        %v654 = vpack.c.b16 %v641, %v640
        %v655 = vpack.c.b16 %v643, %v642
        %v656 = vpack.c.b16 %v645, %v644
        %v657 = vpack.c.b16 %v647, %v646
        %v658 = vpack.c.b16 %v649, %v648
        %v659 = vpack.c.b16 %v651, %v650
        %668 = vmatprep.subr.bf16.mxu0 0
        %669 = vmatpush1.bf16.msra.mxu0 %v652
        %670 = vmatprep.subr.bf16.mxu0 0
        %671 = vmatpush1.bf16.msra.mxu0 %v653
        %672 = vmatprep.subr.bf16.mxu0 0
        %673 = vmatpush1.bf16.msra.mxu0 %v654
        %674 = vmatprep.subr.bf16.mxu0 0
        %675 = vmatpush1.bf16.msra.mxu0 %v655
        %676 = vmatprep.subr.bf16.mxu0 0
        %677 = vmatpush1.bf16.msra.mxu0 %v656
        %678 = vmatprep.subr.bf16.mxu0 0
        %679 = vmatpush1.bf16.msra.mxu0 %v657
        %680 = vmatprep.subr.bf16.mxu0 0
        %681 = vmatpush1.bf16.msra.mxu0 %v658
        %682 = vmatprep.subr.bf16.mxu0 0
        %683 = vmatpush1.bf16.msra.mxu0 %v659
        %684 = vmatprep.subr.bf16.mxu0 0
        %685 = vmatpush1.bf16.msra.mxu0 0
        %686 = vmatprep.subr.bf16.mxu0 0
        %687 = vmatpush1.bf16.msra.mxu0 0
        %688 = vmatprep.subr.bf16.mxu0 0
        %689 = vmatpush1.bf16.msra.mxu0 0
        %690 = vmatprep.subr.bf16.mxu0 0
        %691 = vmatpush1.bf16.msra.mxu0 0
        %692 = vmatprep.subr.bf16.mxu0 0
        %693 = vmatpush1.bf16.msra.mxu0 0
        %694 = vmatprep.subr.bf16.mxu0 0
        %695 = vmatpush1.bf16.msra.mxu0 0
        %696 = vmatprep.subr.bf16.mxu0 0
        %697 = vmatpush1.bf16.msra.mxu0 0
        %698 = vmatprep.subr.bf16.mxu0 0
        %699 = vmatpush1.bf16.msra.mxu0 0
        %700 = vmatprep.mubr.bf16.mxu0 0
        %701 = vmatmul.mubr.bf16.gmra.mrb[0].mxu0 %v602
        %v702 = vpop.f32.mrb[0].mxu0
        %v703 = vadd.f32 0.0, %v702
        %v704 = vpop.f32.mrb[0].mxu0
        %v705 = vpop.f32.mrb[0].mxu0
        %v706 = vadd.f32 0.0, %v705
        %v707 = vpop.f32.mrb[0].mxu0
        %708 = vmatprep.mubr.bf16.mxu0 0
        %709 = vmatmul.mubr.bf16.gmra.mrb[0].mxu0 %v603
        %v710 = vpop.f32.mrb[0].mxu0
        %v711 = vadd.f32 0.0, %v710
        %v712 = vpop.f32.mrb[0].mxu0
        %v713 = vpop.f32.mrb[0].mxu0
        %v714 = vpop.f32.mrb[0].mxu0
        %715 = vdwg.mxu0
        %v716 = vpack.c.bf16 %v706, %v703
        %v717 = vpack.c.bf16 %v711, %v711
        %v718 = vld [vmem:[%s492] sm:$0x1]
        %v719 = vpack.c.bf16 %v718, %v718
        %v721 = vpack.i.b16 %v719, %v719
        %v723 = vlaneseq
        %v724 = vshrl.u32 %v723, 7
        %v725 = vsub.s32 0, %v724
        %v726 = vrot.slane %v721, %v725
        %v727 = vadd.bf16 %v716, %v726
        %v728 = vadd.bf16 %v717, %v726
        %v729 = vmax.bf16 %v727, 0
        %v730 = vmax.bf16 %v728, 0
        %v731 = vld [vmem:[%s400] sm:$0xf]
        %v732 = vld [vmem:[%s400 + $0x4] sm:$0xf]
        %v733 = vld [vmem:[%s400 + $0x8] sm:$0xf]
        %v734 = vld [vmem:[%s400 + $0xc] sm:$0xf]
        %v735 = vld [vmem:[%s400 + $0x10] sm:$0xf]
        %v736 = vld [vmem:[%s400 + $0x14] sm:$0xf]
        %v737 = vld [vmem:[%s400 + $0x18] sm:$0xf]
        %v738 = vld [vmem:[%s400 + $0x1c] sm:$0xf]
        %v739 = vld [vmem:[%s400 + $0x20] sm:$0xf]
        %v740 = vld [vmem:[%s400 + $0x24] sm:$0xf]
        %v741 = vld [vmem:[%s400 + $0x28] sm:$0xf]
        %v742 = vld [vmem:[%s400 + $0x2c] sm:$0xf]
        %v743 = vld [vmem:[%s400 + $0x30] sm:$0xf]
        %v744 = vld [vmem:[%s400 + $0x34] sm:$0xf]
        %v745 = vld [vmem:[%s400 + $0x38] sm:$0xf]
        %v746 = vld [vmem:[%s400 + $0x3c] sm:$0xf]
        %v763 = vunpack.c.l.b16 %v731
        %v764 = vunpack.c.l.b16 %v732
        %v765 = vunpack.c.l.b16 %v733
        %v766 = vunpack.c.l.b16 %v734
        %v767 = vunpack.c.l.b16 %v735
        %v768 = vunpack.c.l.b16 %v736
        %v769 = vunpack.c.l.b16 %v737
        %v770 = vunpack.c.l.b16 %v738
        %v771 = vunpack.c.l.b16 %v739
        %v772 = vunpack.c.l.b16 %v740
        %v773 = vunpack.c.l.b16 %v741
        %v774 = vunpack.c.l.b16 %v742
        %v775 = vunpack.c.l.b16 %v743
        %v776 = vunpack.c.l.b16 %v744
        %v777 = vunpack.c.l.b16 %v745
        %v778 = vunpack.c.l.b16 %v746
        %v779 = vpack.c.b16 %v764, %v763
        %v780 = vpack.c.b16 %v766, %v765
        %v781 = vpack.c.b16 %v768, %v767
        %v782 = vpack.c.b16 %v770, %v769
        %v783 = vpack.c.b16 %v772, %v771
        %v784 = vpack.c.b16 %v774, %v773
        %v785 = vpack.c.b16 %v776, %v775
        %v786 = vpack.c.b16 %v778, %v777
        %795 = vmatprep.subr.bf16.mxu0 0
        %796 = vmatpush1.bf16.msra.mxu0 %v779
        %797 = vmatprep.subr.bf16.mxu0 0
        %798 = vmatpush1.bf16.msra.mxu0 %v780
        %799 = vmatprep.subr.bf16.mxu0 0
        %800 = vmatpush1.bf16.msra.mxu0 %v781
        %801 = vmatprep.subr.bf16.mxu0 0
        %802 = vmatpush1.bf16.msra.mxu0 %v782
        %803 = vmatprep.subr.bf16.mxu0 0
        %804 = vmatpush1.bf16.msra.mxu0 %v783
        %805 = vmatprep.subr.bf16.mxu0 0
        %806 = vmatpush1.bf16.msra.mxu0 %v784
        %807 = vmatprep.subr.bf16.mxu0 0
        %808 = vmatpush1.bf16.msra.mxu0 %v785
        %809 = vmatprep.subr.bf16.mxu0 0
        %810 = vmatpush1.bf16.msra.mxu0 %v786
        %811 = vmatprep.subr.bf16.mxu0 0
        %812 = vmatpush1.bf16.msra.mxu0 0
        %813 = vmatprep.subr.bf16.mxu0 0
        %814 = vmatpush1.bf16.msra.mxu0 0
        %815 = vmatprep.subr.bf16.mxu0 0
        %816 = vmatpush1.bf16.msra.mxu0 0
        %817 = vmatprep.subr.bf16.mxu0 0
        %818 = vmatpush1.bf16.msra.mxu0 0
        %819 = vmatprep.subr.bf16.mxu0 0
        %820 = vmatpush1.bf16.msra.mxu0 0
        %821 = vmatprep.subr.bf16.mxu0 0
        %822 = vmatpush1.bf16.msra.mxu0 0
        %823 = vmatprep.subr.bf16.mxu0 0
        %824 = vmatpush1.bf16.msra.mxu0 0
        %825 = vmatprep.subr.bf16.mxu0 0
        %826 = vmatpush1.bf16.msra.mxu0 0
        %827 = vmatprep.mubr.bf16.mxu0 0
        %828 = vmatmul.mubr.bf16.gmra.mrb[0].mxu0 %v729
        %v829 = vpop.f32.mrb[0].mxu0
        %v830 = vadd.f32 0.0, %v829
        %v831 = vpop.f32.mrb[0].mxu0
        %v832 = vpop.f32.mrb[0].mxu0
        %v833 = vadd.f32 0.0, %v832
        %v834 = vpop.f32.mrb[0].mxu0
        %835 = vmatprep.mubr.bf16.mxu0 0
        %836 = vmatmul.mubr.bf16.gmra.mrb[0].mxu0 %v730
        %v837 = vpop.f32.mrb[0].mxu0
        %v838 = vadd.f32 0.0, %v837
        %v839 = vpop.f32.mrb[0].mxu0
        %v840 = vpop.f32.mrb[0].mxu0
        %v841 = vpop.f32.mrb[0].mxu0
        %842 = vdwg.mxu0
        %v843 = vpack.c.bf16 %v833, %v830
        %v844 = vpack.c.bf16 %v838, %v838
        %v845 = vld [vmem:[%s495] sm:$0x1]
        %v846 = vpack.c.bf16 %v845, %v845
        %v848 = vpack.i.b16 %v846, %v846
        %v850 = vlaneseq
        %v851 = vshrl.u32 %v850, 7
        %v852 = vsub.s32 0, %v851
        %v853 = vrot.slane %v848, %v852
        %v854 = vadd.bf16 %v843, %v853
        %v855 = vadd.bf16 %v844, %v853
        %v856 = vmax.bf16 %v854, 0
        %v857 = vmax.bf16 %v855, 0
        %v858 = vld [vmem:[%s500] sm:$0xf]
        %v859 = vld [vmem:[%s500 + $0x4] sm:$0xf]
        %v860 = vld [vmem:[%s500 + $0x8] sm:$0xf]
        %v861 = vld [vmem:[%s500 + $0xc] sm:$0xf]
        %v862 = vld [vmem:[%s500 + $0x10] sm:$0xf]
        %v863 = vld [vmem:[%s500 + $0x14] sm:$0xf]
        %v864 = vld [vmem:[%s500 + $0x18] sm:$0xf]
        %v865 = vld [vmem:[%s500 + $0x1c] sm:$0xf]
        %v866 = vld [vmem:[%s500 + $0x20] sm:$0xf]
        %v867 = vld [vmem:[%s500 + $0x24] sm:$0xf]
        %v868 = vld [vmem:[%s500 + $0x28] sm:$0xf]
        %v869 = vld [vmem:[%s500 + $0x2c] sm:$0xf]
        %v870 = vld [vmem:[%s500 + $0x30] sm:$0xf]
        %v871 = vld [vmem:[%s500 + $0x34] sm:$0xf]
        %v872 = vld [vmem:[%s500 + $0x38] sm:$0xf]
        %v873 = vld [vmem:[%s500 + $0x3c] sm:$0xf]
        %v874 = vld [vmem:[%s503] sm:$0x1]
        %v876 = vlaneseq
        %v877 = vshrl.u32 %v876, 7
        %v878 = vsub.s32 0, %v877
        %v879 = vrot.slane %v874, %v878
        %v897 = vunpack.c.l.b16 %v858
        %v898 = vunpack.c.l.b16 %v859
        %v899 = vunpack.c.l.b16 %v860
        %v900 = vunpack.c.l.b16 %v861
        %v901 = vunpack.c.l.b16 %v862
        %v902 = vunpack.c.l.b16 %v863
        %v903 = vunpack.c.l.b16 %v864
        %v904 = vunpack.c.l.b16 %v865
        %v905 = vunpack.c.l.b16 %v866
        %v906 = vunpack.c.l.b16 %v867
        %v907 = vunpack.c.l.b16 %v868
        %v908 = vunpack.c.l.b16 %v869
        %v909 = vunpack.c.l.b16 %v870
        %v910 = vunpack.c.l.b16 %v871
        %v911 = vunpack.c.l.b16 %v872
        %v912 = vunpack.c.l.b16 %v873
        %v913 = vpack.c.b16 %v898, %v897
        %v914 = vpack.c.b16 %v900, %v899
        %v915 = vpack.c.b16 %v902, %v901
        %v916 = vpack.c.b16 %v904, %v903
        %v917 = vpack.c.b16 %v906, %v905
        %v918 = vpack.c.b16 %v908, %v907
        %v919 = vpack.c.b16 %v910, %v909
        %v920 = vpack.c.b16 %v912, %v911
        %929 = vmatprep.subr.bf16.mxu0 0
        %930 = vmatpush1.bf16.msra.mxu0 %v913
        %931 = vmatprep.subr.bf16.mxu0 0
        %932 = vmatpush1.bf16.msra.mxu0 %v914
        %933 = vmatprep.subr.bf16.mxu0 0
        %934 = vmatpush1.bf16.msra.mxu0 %v915
        %935 = vmatprep.subr.bf16.mxu0 0
        %936 = vmatpush1.bf16.msra.mxu0 %v916
        %937 = vmatprep.subr.bf16.mxu0 0
        %938 = vmatpush1.bf16.msra.mxu0 %v917
        %939 = vmatprep.subr.bf16.mxu0 0
        %940 = vmatpush1.bf16.msra.mxu0 %v918
        %941 = vmatprep.subr.bf16.mxu0 0
        %942 = vmatpush1.bf16.msra.mxu0 %v919
        %943 = vmatprep.subr.bf16.mxu0 0
        %944 = vmatpush1.bf16.msra.mxu0 %v920
        %945 = vmatprep.subr.bf16.mxu0 0
        %946 = vmatpush1.bf16.msra.mxu0 0
        %947 = vmatprep.subr.bf16.mxu0 0
        %948 = vmatpush1.bf16.msra.mxu0 0
        %949 = vmatprep.subr.bf16.mxu0 0
        %950 = vmatpush1.bf16.msra.mxu0 0
        %951 = vmatprep.subr.bf16.mxu0 0
        %952 = vmatpush1.bf16.msra.mxu0 0
        %953 = vmatprep.subr.bf16.mxu0 0
        %954 = vmatpush1.bf16.msra.mxu0 0
        %955 = vmatprep.subr.bf16.mxu0 0
        %956 = vmatpush1.bf16.msra.mxu0 0
        %957 = vmatprep.subr.bf16.mxu0 0
        %958 = vmatpush1.bf16.msra.mxu0 0
        %959 = vmatprep.subr.bf16.mxu0 0
        %960 = vmatpush1.bf16.msra.mxu0 0
        %961 = vmatprep.mubr.bf16.mxu0 0
        %962 = vmatmul.mubr.bf16.gmra.mrb[0].mxu0 %v856
        %v963 = vpop.f32.mrb[0].mxu0
        %v964 = vadd.f32 %v879, %v963
        %v965 = vpop.f32.mrb[0].mxu0
        %v966 = vpop.f32.mrb[0].mxu0
        %v967 = vadd.f32 %v879, %v966
        %v968 = vpop.f32.mrb[0].mxu0
        %969 = vmatprep.mubr.bf16.mxu0 0
        %970 = vmatmul.mubr.bf16.gmra.mrb[0].mxu0 %v857
        %v971 = vpop.f32.mrb[0].mxu0
        %v972 = vadd.f32 %v879, %v971
        %v973 = vpop.f32.mrb[0].mxu0
        %v974 = vpop.f32.mrb[0].mxu0
        %v975 = vpop.f32.mrb[0].mxu0
        %976 = vdwg.mxu0
        %vm977 = vcmask 64512
        %978 = vst.msk [vmem:[%s512] sm:$0xff] %vm977, %v964
        %979 = vst.msk [vmem:[%s512 + $0x8] sm:$0xff] %vm977, %v967
        %980 = vst.msk [vmem:[%s512 + $0x10] sm:$0xff] %vm977, %v972
        %s981 = smul.u32 3, %s28
        %p982 = scmp.lt.s32.totalorder %s27, 1
        %s983 = scalar_select %p982, %s27, 1
        %p984 = scmp.lt.s32.totalorder %s981, 2
        %s985 = scalar_select %p984, %s981, 2
        %s986 = smul.addr %s983, 3
        %s987 = sadd.s32 %s985, %s986
        %s988 = smul.addr %s987, 8
        %s989 = scalar_lea.vmem %s9, %s988
        // Predicated region
        $region61: #{tpu_custom_call.1} parent=55 // pred_check
          %p990 = pneg %p289
        $region62: #{tpu_custom_call.1} parent=55 // pred_check_branch
          %992 = sbr.rel (%p990) target = $region64
        $region63: #{tpu_custom_call.1} parent=55 // pred_region
          %s993 = smul.u32 3, %s28
        $region64: #{tpu_custom_call.1} parent=55 // pred_fallthru
          _
      $region56: #{tpu_custom_call.1} parent=5 // pred_fallthru
        _
      %p994 = scmp.le.s32.totalorder 2, %s18
      // Predicated region
      $region65: #{tpu_custom_call.1} parent=5 // pred_check
        %p995 = pneg %p994
      $region66: #{tpu_custom_call.1} parent=5 // pred_check_branch
        %997 = sbr.rel (%p995) target = $region68
      $region67: #{tpu_custom_call.1} parent=5 // pred_region
        %s998 = ssub.s32 %s18, 2
        // Predicated region
        $region69: #{tpu_custom_call.1} parent=67 // pred_check
          %p999 = pneg %p295
        $region70: #{tpu_custom_call.1} parent=67 // pred_check_branch
          %1001 = sbr.rel (%p999) target = $region72
        $region71: #{tpu_custom_call.1} parent=67 // pred_region
          %s1002 = smul.u32 3, %s30
          %p1003 = scmp.lt.s32.totalorder %s29, 1
          %s1004 = scalar_select %p1003, %s29, 1
          %p1005 = scmp.lt.s32.totalorder %s1002, 2
          %s1006 = scalar_select %p1005, %s1002, 2
          %s1007 = smul.addr %s1004, 3
          %s1008 = sadd.s32 %s1006, %s1007
          %s1009 = smul.addr %s1008, 8
          %s1010 = scalar_lea.vmem %s9, %s1009
        $region72: #{tpu_custom_call.1} parent=67 // pred_fallthru
          _
      $region68: #{tpu_custom_call.1} parent=5 // pred_fallthru
        _
    $region6: #{tpu_custom_call.1} parent=1 // loop_footer
      %s22 = sadd.s32 1, %s18
    $region7: #{tpu_custom_call.1} parent=1 // loop_footer_branch
      %17 = sbr.rel target = $region3
    $region8: #{tpu_custom_call.1} parent=1 // loop_exit
      _
    %1011 = vsyncpa [#allocation3], 1
    %s1012 = scalar_lea.sflag [#allocation3], 1
    %1013 = vsyncpa %s1012, 1

</llo_original>
